<compile_context>
chip_gen: v6e
topology: v6e:2x2x1
jax: 0.10.0
libtpu: 0.0.40
codegen_flags: <defaults>
</compile_context>

<pallas_src>
import jax
import jax.numpy as jnp
from jax.experimental import pallas as pl
from jax.experimental.pallas import tpu as pltpu


# ---------------------------------------------------------------------------
# Fused kernel.  Shapes inside the kernel (tile_m2 = lane-dense block of pooled voxels):
#   x_ref  : (kp, 8*tile_m2)      bf16 im2col'd input; 8 contiguous tap slabs per tile
#   w1_ref : (64, kp)             bf16 Conv3d weight (contraction zero-padded to kp)
#   b1_ref : (64, 1)              f32  Conv3d bias
#   wt_ref : (Cout*8, 64)         bf16 ConvTranspose3d weights, rows ordered c*8 + tap
#   b2_ref : (Cout*8, 1)          f32  ConvTranspose3d bias (repeated per tap)
#   o_ref  : (Cout, 8, tile_m2)   f32  softmax probabilities (lane-dense last dim)
# ---------------------------------------------------------------------------
def fcnn3d_fused_kernel(x_ref, w1_ref, b1_ref, wt_ref, b2_ref, o_ref):
    cout, n_taps, tile_m2 = o_ref.shape

    # Conv3d as ONE wide GEMM over all 8 pooling taps at once (bf16 MXU, f32 acc).
    conv = jnp.dot(w1_ref[...], x_ref[...],
                   preferred_element_type=jnp.float32)            # (64, 8*tile_m2)

    # MaxPool3d(2,2) fused: running max over the 8 lane-tile-aligned tap slabs (VPU).
    pooled = conv[:, 0:tile_m2]
    for t in range(1, n_taps):
        pooled = jnp.maximum(pooled, conv[:, t * tile_m2:(t + 1) * tile_m2])
    # Bias + ReLU applied once (both commute with the element-wise max).
    pooled = jnp.maximum(pooled + b1_ref[...], 0.0)                # (64, tile_m2) f32

    # ConvTranspose3d(k=2,s=2): all 8 output taps x Cout channels in ONE GEMM.
    logits = jnp.dot(wt_ref[...], pooled.astype(wt_ref.dtype),
                     preferred_element_type=jnp.float32) + b2_ref[...]
    # Rows are channel-major (c*8 + tap) -> sublane-tile aligned reshape.
    l3 = logits.reshape(cout, n_taps, tile_m2)                     # (Cout, 8, tile_m2)

    # Softmax over the channel axis (axis 0): VPU max/sum across Cout slabs, EUP recip.
    m = jnp.max(l3, axis=0, keepdims=True)
    e = jnp.exp(l3 - m)
    inv = pl.reciprocal(jnp.sum(e, axis=0, keepdims=True), approx=True)
    o_ref[...] = e * inv


def _pick_tile_m2(m2p):
    # m2p is a multiple of 128.  Prefer the largest tile that still leaves >= 2 grid
    # steps (pipelining + v7x megacore); cap at 2048 (fits v7x's 64 MiB VMEM easily).
    if m2p <= 128:
        return m2p
    for cand in (2048, 1024, 512, 256, 128):
        if m2p % cand == 0 and m2p // cand >= 2:
            return cand
    return 128


def _fcnn3d_pallas(x_wide, w1T, b1c, wtT, b2c, cout, tile_m2):
    kp, total = x_wide.shape
    cmid = w1T.shape[0]
    n_taps = 8
    n_tiles = total // (n_taps * tile_m2)
    m2p = n_tiles * tile_m2

    # Explicit VMEM budget: double-buffered x + output blocks, plus f32 temporaries
    # (conv, pooled, logits/exp/prob) and resident weights; generous headroom but
    # capped at 64 MiB so it is valid on v7x as well as v5e/v6e.
    x_blk = kp * n_taps * tile_m2 * 2                       # bf16 input block
    out_blk = cout * n_taps * tile_m2 * 4                   # f32 output block
    tmp = (cmid * n_taps * tile_m2 + cmid * tile_m2
           + 3 * cout * n_taps * tile_m2) * 4
    vmem_bytes = int(min(64 * 1024 * 1024,
                         max(32 * 1024 * 1024,
                             2 * (x_blk + out_blk) + tmp + (1 << 20))))

    return pl.pallas_call(
        fcnn3d_fused_kernel,
        out_shape=jax.ShapeDtypeStruct((cout, n_taps, m2p), jnp.float32),
        grid=(n_tiles,),
        in_specs=[
            pl.BlockSpec((kp, n_taps * tile_m2), lambda i: (0, i)),
            pl.BlockSpec((cmid, kp), lambda i: (0, 0)),
            pl.BlockSpec((cmid, 1), lambda i: (0, 0)),
            pl.BlockSpec((cout * n_taps, cmid), lambda i: (0, 0)),
            pl.BlockSpec((cout * n_taps, 1), lambda i: (0, 0)),
        ],
        out_specs=pl.BlockSpec((cout, n_taps, tile_m2), lambda i: (0, 0, i)),
        compiler_params=pltpu.CompilerParams(
            dimension_semantics=("parallel",),
            vmem_limit_bytes=vmem_bytes),
    )(x_wide, w1T, b1c, wtT, b2c)


# ---------------------------------------------------------------------------
# Wrapper: layout glue (im2col, GEMM-form parameters, final stride-2 scatter).
# ---------------------------------------------------------------------------
def fcnn3d_forward(x, w1, b1, wt, b2):
    n, cin, d, h, w = x.shape
    cmid = w1.shape[0]            # 64
    cout = wt.shape[1]
    assert d % 2 == 0 and h % 2 == 0 and w % 2 == 0, "spatial dims must be even"
    d2, h2, w2 = d // 2, h // 2, w // 2
    m2 = n * d2 * h2 * w2
    k = 27 * cin
    kp = ((k + 15) // 16) * 16                           # bf16 sublane multiple, NOT 128
    m2p = ((m2 + 127) // 128) * 128                      # lane multiple -> unmasked vst

    # im2col, tap-major layout: xT[tap(dd,hh,ww), k(kd,kh,kw,cin), m2(n,d2,h2,w2)]
    x_ndhwc = jnp.transpose(x, (0, 2, 3, 4, 1))
    xp = jnp.pad(x_ndhwc, ((0, 0), (1, 1), (1, 1), (1, 1), (0, 0)))
    slabs = []
    for kd in range(3):
        for kh in range(3):
            for kw in range(3):
                slabs.append(xp[:, kd:kd + d, kh:kh + h, kw:kw + w, :])
    patches = jnp.stack(slabs, axis=-2)                  # (N, D, H, W, 27, Cin)
    patches = patches.reshape(n, d2, 2, h2, 2, w2, 2, k)
    xT = jnp.transpose(patches, (2, 4, 6, 7, 0, 1, 3, 5)).reshape(8, k, m2)
    xT = jnp.pad(xT, ((0, 0), (0, kp - k), (0, m2p - m2)))

    # Re-layout so each grid tile holds its 8 tap slabs contiguously on the lane axis:
    # (8, kp, m2p) -> (kp, n_tiles * 8 * tile_m2); every tap slab is tile_m2 (%128==0)
    # lanes wide, so in-kernel static slices are lane-tile aligned.
    tile_m2 = _pick_tile_m2(m2p)
    n_tiles = m2p // tile_m2
    x_wide = jnp.transpose(xT.reshape(8, kp, n_tiles, tile_m2), (1, 2, 0, 3))
    x_wide = x_wide.reshape(kp, n_tiles * 8 * tile_m2).astype(jnp.bfloat16)

    # Parameters in GEMM layout (weights bf16, biases f32).
    w1T = jnp.transpose(w1, (0, 2, 3, 4, 1)).reshape(cmid, k)         # (64, 27*Cin)
    w1T = jnp.pad(w1T, ((0, 0), (0, kp - k))).astype(jnp.bfloat16)
    b1c = b1.reshape(cmid, 1).astype(jnp.float32)
    wtT = jnp.transpose(wt, (1, 2, 3, 4, 0)).reshape(cout * 8, cmid)  # rows = c*8 + tap
    wtT = wtT.astype(jnp.bfloat16)
    b2c = jnp.repeat(b2, 8).reshape(cout * 8, 1).astype(jnp.float32)

    y = _fcnn3d_pallas(x_wide, w1T, b1c, wtT, b2c, cout, tile_m2)     # (Cout, 8, M2p)
    y = y[:, :, :m2]                                                   # crop lane padding

    # Scatter deconv taps back to full resolution: out[n,c,2d2+dd,2h2+hh,2w2+ww].
    y = y.reshape(cout, 2, 2, 2, n, d2, h2, w2)
    out = jnp.transpose(y, (4, 0, 5, 1, 6, 2, 7, 3)).reshape(n, cout, d, h, w)
    return out


# ---------------------------------------------------------------------------
# Pure-JAX reference (independent implementation) for correctness checking.
# ---------------------------------------------------------------------------
def fcnn3d_reference(x, w1, b1, wt, b2):
    y = jax.lax.conv_general_dilated(
        x, w1, window_strides=(1, 1, 1), padding=((1, 1), (1, 1), (1, 1)),
        dimension_numbers=("NCDHW", "OIDHW", "NCDHW"))
    y = jnp.maximum(y + b1.reshape(1, -1, 1, 1, 1), 0.0)
    y = jax.lax.reduce_window(y, -jnp.inf, jax.lax.max,
                              (1, 1, 2, 2, 2), (1, 1, 2, 2, 2), "VALID")
    # ConvTranspose3d(k=2,s=2) == dilated conv with flipped kernel & swapped channels.
    wt_oi = jnp.transpose(wt[:, :, ::-1, ::-1, ::-1], (1, 0, 2, 3, 4))
    z = jax.lax.conv_general_dilated(
        y, wt_oi, window_strides=(1, 1, 1), padding=((1, 1), (1, 1), (1, 1)),
        lhs_dilation=(2, 2, 2),
        dimension_numbers=("NCDHW", "OIDHW", "NCDHW"))
    z = z + b2.reshape(1, -1, 1, 1, 1)
    return jax.nn.softmax(z, axis=1)


# ---------------------------------------------------------------------------
if __name__ == "__main__":
    N, Cin, Cout, D, H, W = 2, 4, 3, 8, 8, 8

    key = jax.random.PRNGKey(0)
    k1, k2, k3, k4, kx = jax.random.split(key, 5)
    # Deterministic synthetic parameters (same shapes as the PyTorch module).
    w1 = jax.random.normal(k1, (64, Cin, 3, 3, 3), jnp.float32) * 0.1   # Conv3d weight
    b1 = jax.random.normal(k2, (64,), jnp.float32) * 0.1                # Conv3d bias
    wt = jax.random.normal(k3, (64, Cout, 2, 2, 2), jnp.float32) * 0.1  # ConvTranspose3d weight
    b2 = jax.random.normal(k4, (Cout,), jnp.float32) * 0.1              # ConvTranspose3d bias
    x = jax.random.normal(kx, (N, Cin, D, H, W), jnp.float32)

    out = jax.block_until_ready(jax.jit(fcnn3d_forward)(x, w1, b1, wt, b2))

    assert out.shape == (N, Cout, D, H, W), out.shape
    # Softmax over dim=1 must sum to ~1 (approx reciprocal -> loose tolerance).
    chan_sum = jnp.sum(out, axis=1)
    assert bool(jnp.allclose(chan_sum, 1.0, atol=5e-3)), "softmax sum check failed"
    # Compare against an independent pure-JAX f32 reference (bf16 inputs + f32 acc
    # in the kernel -> tolerance re-validated at 2.5e-2).
    ref = fcnn3d_reference(x, w1, b1, wt, b2)
    max_err = float(jnp.max(jnp.abs(out - ref)))
    assert max_err < 2.5e-2, f"mismatch vs reference: max abs err = {max_err}"

    print("KERNEL_OK")
</pallas_src>

<mosaic_0001>
module attributes {stable_mosaic.version = 11 : i64} {
  func.func @fcnn3d_fused_kernel(%arg0: i32, %arg1: memref<112x1024xbf16, #tpu.memory_space<vmem>>, %arg2: memref<64x112xbf16, #tpu.memory_space<vmem>>, %arg3: memref<64x1xf32, #tpu.memory_space<vmem>>, %arg4: memref<24x64xbf16, #tpu.memory_space<vmem>>, %arg5: memref<24x1xf32, #tpu.memory_space<vmem>>, %arg6: memref<3x8x128xf32, #tpu.memory_space<vmem>>) attributes {dimension_semantics = [#tpu.dimension_semantics<parallel>], iteration_bounds = array<i64: 1>, scalar_prefetch = 0 : i64, scratch_operands = 0 : i64, tpu.core_type = #tpu.core_type<tc>, window_params = [{transform_indices = @transform_0, window_bounds = array<i64: 112, 1024>}, {pipeline_mode = #tpu.pipeline_mode<synchronous>, transform_indices = @transform_1, window_bounds = array<i64: 64, 112>}, {pipeline_mode = #tpu.pipeline_mode<synchronous>, transform_indices = @transform_2, window_bounds = array<i64: 64, 1>}, {pipeline_mode = #tpu.pipeline_mode<synchronous>, transform_indices = @transform_3, window_bounds = array<i64: 24, 64>}, {pipeline_mode = #tpu.pipeline_mode<synchronous>, transform_indices = @transform_4, window_bounds = array<i64: 24, 1>}, {transform_indices = @transform_5, window_bounds = array<i64: 3, 8, 128>}]} {
    %c0 = arith.constant 0 : index
    %c0_0 = arith.constant 0 : index
    %0 = vector.load %arg2[%c0, %c0_0] : memref<64x112xbf16, #tpu.memory_space<vmem>>, vector<64x112xbf16>
    %c0_1 = arith.constant 0 : index
    %c0_2 = arith.constant 0 : index
    %1 = vector.load %arg1[%c0_1, %c0_2] : memref<112x1024xbf16, #tpu.memory_space<vmem>>, vector<112x1024xbf16>
    %cst = arith.constant dense<0.000000e+00> : vector<64x1024xf32>
    %2 = tpu.matmul %0, %1, %cst {dimension_numbers = #tpu.dot_dimension_numbers<[1], [0], [0], [1], [0, 0, 1, 1], [], []>} : vector<64x112xbf16>, vector<112x1024xbf16>, vector<64x1024xf32> -> vector<64x1024xf32>
    %3 = vector.extract_strided_slice %2 {offsets = [0, 0], sizes = [64, 128], strides = [1, 1]} : vector<64x1024xf32> to vector<64x128xf32>
    %4 = vector.extract_strided_slice %2 {offsets = [0, 128], sizes = [64, 128], strides = [1, 1]} : vector<64x1024xf32> to vector<64x128xf32>
    %5 = arith.maximumf %3, %4 : vector<64x128xf32>
    %6 = vector.extract_strided_slice %2 {offsets = [0, 256], sizes = [64, 128], strides = [1, 1]} : vector<64x1024xf32> to vector<64x128xf32>
    %7 = arith.maximumf %5, %6 : vector<64x128xf32>
    %8 = vector.extract_strided_slice %2 {offsets = [0, 384], sizes = [64, 128], strides = [1, 1]} : vector<64x1024xf32> to vector<64x128xf32>
    %9 = arith.maximumf %7, %8 : vector<64x128xf32>
    %10 = vector.extract_strided_slice %2 {offsets = [0, 512], sizes = [64, 128], strides = [1, 1]} : vector<64x1024xf32> to vector<64x128xf32>
    %11 = arith.maximumf %9, %10 : vector<64x128xf32>
    %12 = vector.extract_strided_slice %2 {offsets = [0, 640], sizes = [64, 128], strides = [1, 1]} : vector<64x1024xf32> to vector<64x128xf32>
    %13 = arith.maximumf %11, %12 : vector<64x128xf32>
    %14 = vector.extract_strided_slice %2 {offsets = [0, 768], sizes = [64, 128], strides = [1, 1]} : vector<64x1024xf32> to vector<64x128xf32>
    %15 = arith.maximumf %13, %14 : vector<64x128xf32>
    %16 = vector.extract_strided_slice %2 {offsets = [0, 896], sizes = [64, 128], strides = [1, 1]} : vector<64x1024xf32> to vector<64x128xf32>
    %17 = arith.maximumf %15, %16 : vector<64x128xf32>
    %c0_3 = arith.constant 0 : index
    %c0_4 = arith.constant 0 : index
    %18 = vector.load %arg3[%c0_3, %c0_4] : memref<64x1xf32, #tpu.memory_space<vmem>>, vector<64x1xf32>
    %19 = vector.broadcast %18 : vector<64x1xf32> to vector<64x128xf32>
    %20 = arith.addf %17, %19 : vector<64x128xf32>
    %cst_5 = arith.constant 0.000000e+00 : f32
    %21 = vector.broadcast %cst_5 : f32 to vector<64x128xf32>
    %22 = arith.maximumf %20, %21 : vector<64x128xf32>
    %c0_6 = arith.constant 0 : index
    %c0_7 = arith.constant 0 : index
    %23 = vector.load %arg4[%c0_6, %c0_7] : memref<24x64xbf16, #tpu.memory_space<vmem>>, vector<24x64xbf16>
    %24 = arith.truncf %22 : vector<64x128xf32> to vector<64x128xbf16>
    %cst_8 = arith.constant dense<0.000000e+00> : vector<24x128xf32>
    %25 = tpu.matmul %23, %24, %cst_8 {dimension_numbers = #tpu.dot_dimension_numbers<[1], [0], [0], [1], [0, 0, 1, 1], [], []>} : vector<24x64xbf16>, vector<64x128xbf16>, vector<24x128xf32> -> vector<24x128xf32>
    %c0_9 = arith.constant 0 : index
    %c0_10 = arith.constant 0 : index
    %26 = vector.load %arg5[%c0_9, %c0_10] : memref<24x1xf32, #tpu.memory_space<vmem>>, vector<24x1xf32>
    %27 = vector.broadcast %26 : vector<24x1xf32> to vector<24x128xf32>
    %28 = arith.addf %25, %27 : vector<24x128xf32>
    %29 = vector.shape_cast %28 : vector<24x128xf32> to vector<3x8x128xf32>
    %cst_11 = arith.constant dense<0xFF800000> : vector<8x128xf32>
    %30 = vector.multi_reduction <maximumf>, %29, %cst_11 [0] : vector<3x8x128xf32> to vector<8x128xf32>
    %31 = vector.shape_cast %30 : vector<8x128xf32> to vector<1x8x128xf32>
    %32 = vector.broadcast %31 : vector<1x8x128xf32> to vector<3x8x128xf32>
    %33 = arith.subf %29, %32 : vector<3x8x128xf32>
    %34 = math.exp %33 : vector<3x8x128xf32>
    %cst_12 = arith.constant dense<0.000000e+00> : vector<8x128xf32>
    %35 = vector.multi_reduction <add>, %34, %cst_12 [0] : vector<3x8x128xf32> to vector<8x128xf32>
    %36 = vector.shape_cast %35 : vector<8x128xf32> to vector<1x8x128xf32>
    %37 = tpu.reciprocal %36 {approx = true} : vector<1x8x128xf32> -> vector<1x8x128xf32>
    %38 = vector.broadcast %37 : vector<1x8x128xf32> to vector<3x8x128xf32>
    %39 = arith.mulf %34, %38 : vector<3x8x128xf32>
    %c0_13 = arith.constant 0 : index
    %c0_14 = arith.constant 0 : index
    %c0_15 = arith.constant 0 : index
    %40 = vector.load %arg6[%c0_13, %c0_14, %c0_15] : memref<3x8x128xf32, #tpu.memory_space<vmem>>, vector<3x8x128xf32>
    tpu.vector_store %arg6[%c0_13, %c0_14, %c0_15], %39 {strides = array<i32>} : memref<3x8x128xf32, #tpu.memory_space<vmem>>, vector<3x8x128xf32>,
    return
  }
  func.func @transform_0(%arg0: i32) -> (i32, i32) {
    %c0_i32 = arith.constant 0 : i32
    %c0_i32_0 = arith.constant 0 : i32
    return %c0_i32, %arg0 : i32, i32
  }
  func.func @transform_1(%arg0: i32) -> (i32, i32) {
    %c0_i32 = arith.constant 0 : i32
    %c0_i32_0 = arith.constant 0 : i32
    %c0_i32_1 = arith.constant 0 : i32
    return %c0_i32, %c0_i32_0 : i32, i32
  }
  func.func @transform_2(%arg0: i32) -> (i32, i32) {
    %c0_i32 = arith.constant 0 : i32
    %c0_i32_0 = arith.constant 0 : i32
    %c0_i32_1 = arith.constant 0 : i32
    return %c0_i32, %c0_i32_0 : i32, i32
  }
  func.func @transform_3(%arg0: i32) -> (i32, i32) {
    %c0_i32 = arith.constant 0 : i32
    %c0_i32_0 = arith.constant 0 : i32
    %c0_i32_1 = arith.constant 0 : i32
    return %c0_i32, %c0_i32_0 : i32, i32
  }
  func.func @transform_4(%arg0: i32) -> (i32, i32) {
    %c0_i32 = arith.constant 0 : i32
    %c0_i32_0 = arith.constant 0 : i32
    %c0_i32_1 = arith.constant 0 : i32
    return %c0_i32, %c0_i32_0 : i32, i32
  }
  func.func @transform_5(%arg0: i32) -> (i32, i32, i32) {
    %c0_i32 = arith.constant 0 : i32
    %c0_i32_0 = arith.constant 0 : i32
    %c0_i32_1 = arith.constant 0 : i32
    return %c0_i32, %c0_i32_0, %arg0 : i32, i32, i32
  }
}

</mosaic_0001>

<llo_original>
// kernel: fcnn3d_forward.1
$region0: #{fcnn3d_forward.1}
  #allocation0 [shape = 'u32[]', space=smem, size = 0x4, offset = 0x4, fixed_abs, tag = 'smem constant byte address 0x4 - core index']
  #allocation1 [shape = 'u32[144,128]{1,0:T(1,128)}', space=vmem, size = 0x12000, scoped, tag = 'internal scratch']
  %s0 = inlined_call_operand.vmem [shape: bf16[112,1024], index: 0, kind: input, shape index: {}]
  %s1 = inlined_call_operand.vmem [shape: bf16[64,112], index: 1, kind: input, shape index: {}]
  %s2 = inlined_call_operand.vmem [shape: f32[64,1], index: 2, kind: input, shape index: {}]
  %s3 = inlined_call_operand.vmem [shape: bf16[24,64], index: 3, kind: input, shape index: {}]
  %s4 = inlined_call_operand.vmem [shape: f32[24,1], index: 4, kind: input, shape index: {}]
  %s5 = inlined_call_operand.vmem [shape: f32[3,8,128], index: 5, kind: output, shape index: {}]
  %s6 = sld [smem:[#allocation0]]
  $region30: #{fcnn3d_forward.1} parent=0
    _
  %s8 = ssub.s32 1, %s6
  %s9 = scalar_select 0, %s8, %s6
  // Predicated region
  $region2: #{fcnn3d_forward.1} parent=0 // pred_check
    _
  $region3: #{fcnn3d_forward.1} parent=0 // pred_check_branch
    %11 = sbr.rel (0) target = $region5
  $region4: #{fcnn3d_forward.1} parent=0 // pred_region
    _
  $region5: #{fcnn3d_forward.1} parent=0 // pred_fallthru
    _
  // Predicated region
  $region6: #{fcnn3d_forward.1} parent=0 // pred_check
    _
  $region7: #{fcnn3d_forward.1} parent=0 // pred_check_branch
    %13 = sbr.rel (0) target = $region9
  $region8: #{fcnn3d_forward.1} parent=0 // pred_region
    _
  $region9: #{fcnn3d_forward.1} parent=0 // pred_fallthru
    _
  // Predicated region
  $region10: #{fcnn3d_forward.1} parent=0 // pred_check
    _
  $region11: #{fcnn3d_forward.1} parent=0 // pred_check_branch
    %15 = sbr.rel (0) target = $region13
  $region12: #{fcnn3d_forward.1} parent=0 // pred_region
    _
  $region13: #{fcnn3d_forward.1} parent=0 // pred_fallthru
    _
  // Predicated region
  $region14: #{fcnn3d_forward.1} parent=0 // pred_check
    _
  $region15: #{fcnn3d_forward.1} parent=0 // pred_check_branch
    %17 = sbr.rel (0) target = $region17
  $region16: #{fcnn3d_forward.1} parent=0 // pred_region
    _
  $region17: #{fcnn3d_forward.1} parent=0 // pred_fallthru
    _
  // Predicated region
  $region18: #{fcnn3d_forward.1} parent=0 // pred_check
    _
  $region19: #{fcnn3d_forward.1} parent=0 // pred_check_branch
    %19 = sbr.rel (0) target = $region21
  $region20: #{fcnn3d_forward.1} parent=0 // pred_region
    _
  $region21: #{fcnn3d_forward.1} parent=0 // pred_fallthru
    _
  %v21 = vld [vmem:[%s1] sm:$0xf]
  %v22 = vld [vmem:[%s1 + $0x4] sm:$0xf]
  %v23 = vld [vmem:[%s1 + $0x8] sm:$0xf]
  %v24 = vld [vmem:[%s1 + $0xc] sm:$0xf]
  %v25 = vld [vmem:[%s1 + $0x10] sm:$0xf]
  %v26 = vld [vmem:[%s1 + $0x14] sm:$0xf]
  %v27 = vld [vmem:[%s1 + $0x18] sm:$0xf]
  %v28 = vld [vmem:[%s1 + $0x1c] sm:$0xf]
  %v29 = vld [vmem:[%s0] sm:$0xff]
  %v30 = vld [vmem:[%s0 + $0x8] sm:$0xff]
  %v31 = vld [vmem:[%s0 + $0x10] sm:$0xff]
  %v32 = vld [vmem:[%s0 + $0x18] sm:$0xff]
  %v33 = vld [vmem:[%s0 + $0x20] sm:$0xff]
  %v34 = vld [vmem:[%s0 + $0x28] sm:$0xff]
  %v35 = vld [vmem:[%s0 + $0x30] sm:$0xff]
  %v36 = vld [vmem:[%s0 + $0x38] sm:$0xff]
  %v37 = vld [vmem:[%s0 + $0x40] sm:$0xff]
  %v38 = vld [vmem:[%s0 + $0x48] sm:$0xff]
  %v39 = vld [vmem:[%s0 + $0x50] sm:$0xff]
  %v40 = vld [vmem:[%s0 + $0x58] sm:$0xff]
  %v41 = vld [vmem:[%s0 + $0x60] sm:$0xff]
  %v42 = vld [vmem:[%s0 + $0x68] sm:$0xff]
  %v43 = vld [vmem:[%s0 + $0x70] sm:$0xff]
  %v44 = vld [vmem:[%s0 + $0x78] sm:$0xff]
  %v45 = vld [vmem:[%s0 + $0x80] sm:$0xff]
  %v46 = vld [vmem:[%s0 + $0x88] sm:$0xff]
  %v47 = vld [vmem:[%s0 + $0x90] sm:$0xff]
  %v48 = vld [vmem:[%s0 + $0x98] sm:$0xff]
  %v49 = vld [vmem:[%s0 + $0xa0] sm:$0xff]
  %v50 = vld [vmem:[%s0 + $0xa8] sm:$0xff]
  %v51 = vld [vmem:[%s0 + $0xb0] sm:$0xff]
  %v52 = vld [vmem:[%s0 + $0xb8] sm:$0xff]
  %v53 = vld [vmem:[%s0 + $0xc0] sm:$0xff]
  %v54 = vld [vmem:[%s0 + $0xc8] sm:$0xff]
  %v55 = vld [vmem:[%s0 + $0xd0] sm:$0xff]
  %v56 = vld [vmem:[%s0 + $0xd8] sm:$0xff]
  %v57 = vld [vmem:[%s0 + $0xe0] sm:$0xff]
  %v58 = vld [vmem:[%s0 + $0xe8] sm:$0xff]
  %v59 = vld [vmem:[%s0 + $0xf0] sm:$0xff]
  %v60 = vld [vmem:[%s0 + $0xf8] sm:$0xff]
  %v61 = vld [vmem:[%s0 + $0x100] sm:$0xff]
  %v62 = vld [vmem:[%s0 + $0x108] sm:$0xff]
  %v63 = vld [vmem:[%s0 + $0x110] sm:$0xff]
  %v64 = vld [vmem:[%s0 + $0x118] sm:$0xff]
  %v65 = vld [vmem:[%s0 + $0x120] sm:$0xff]
  %v66 = vld [vmem:[%s0 + $0x128] sm:$0xff]
  %v67 = vld [vmem:[%s0 + $0x130] sm:$0xff]
  %v68 = vld [vmem:[%s0 + $0x138] sm:$0xff]
  %v69 = vld [vmem:[%s0 + $0x140] sm:$0xff]
  %v70 = vld [vmem:[%s0 + $0x148] sm:$0xff]
  %v71 = vld [vmem:[%s0 + $0x150] sm:$0xff]
  %v72 = vld [vmem:[%s0 + $0x158] sm:$0xff]
  %v73 = vld [vmem:[%s0 + $0x160] sm:$0xff]
  %v74 = vld [vmem:[%s0 + $0x168] sm:$0xff]
  %v75 = vld [vmem:[%s0 + $0x170] sm:$0xff]
  %v76 = vld [vmem:[%s0 + $0x178] sm:$0xff]
  %v77 = vld [vmem:[%s0 + $0x180] sm:$0xff]
  %v78 = vld [vmem:[%s0 + $0x188] sm:$0xff]
  %v79 = vld [vmem:[%s0 + $0x190] sm:$0xff]
  %v80 = vld [vmem:[%s0 + $0x198] sm:$0xff]
  %v81 = vld [vmem:[%s0 + $0x1a0] sm:$0xff]
  %v82 = vld [vmem:[%s0 + $0x1a8] sm:$0xff]
  %v83 = vld [vmem:[%s0 + $0x1b0] sm:$0xff]
  %v84 = vld [vmem:[%s0 + $0x1b8] sm:$0xff]
  %v93 = vunpack.c.l.b16 %v21
  %v94 = vunpack.c.l.b16 %v22
  %v95 = vunpack.c.l.b16 %v23
  %v96 = vunpack.c.l.b16 %v24
  %v97 = vunpack.c.l.b16 %v25
  %v98 = vunpack.c.l.b16 %v26
  %v99 = vunpack.c.l.b16 %v27
  %v100 = vunpack.c.l.b16 %v28
  %v101 = vpack.c.b16 %v94, %v93
  %v102 = vpack.c.b16 %v96, %v95
  %v103 = vpack.c.b16 %v98, %v97
  %v104 = vpack.c.b16 %v100, %v99
  %v161 = vunpack.c.l.b16 %v29
  %v162 = vunpack.c.h.b16 %v29
  %v163 = vunpack.c.l.b16 %v30
  %v164 = vunpack.c.h.b16 %v30
  %v165 = vunpack.c.l.b16 %v31
  %v166 = vunpack.c.h.b16 %v31
  %v167 = vunpack.c.l.b16 %v32
  %v168 = vunpack.c.h.b16 %v32
  %v169 = vunpack.c.l.b16 %v33
  %v170 = vunpack.c.h.b16 %v33
  %v171 = vunpack.c.l.b16 %v34
  %v172 = vunpack.c.h.b16 %v34
  %v173 = vunpack.c.l.b16 %v35
  %v174 = vunpack.c.h.b16 %v35
  %v175 = vunpack.c.l.b16 %v36
  %v176 = vunpack.c.h.b16 %v36
  %v177 = vunpack.c.l.b16 %v37
  %v178 = vunpack.c.h.b16 %v37
  %v179 = vunpack.c.l.b16 %v38
  %v180 = vunpack.c.h.b16 %v38
  %v181 = vunpack.c.l.b16 %v39
  %v182 = vunpack.c.h.b16 %v39
  %v183 = vunpack.c.l.b16 %v40
  %v184 = vunpack.c.h.b16 %v40
  %v185 = vunpack.c.l.b16 %v41
  %v186 = vunpack.c.h.b16 %v41
  %v187 = vunpack.c.l.b16 %v42
  %v188 = vunpack.c.h.b16 %v42
  %v189 = vunpack.c.l.b16 %v43
  %v190 = vunpack.c.h.b16 %v43
  %v191 = vunpack.c.l.b16 %v44
  %v192 = vunpack.c.h.b16 %v44
  %v193 = vunpack.c.l.b16 %v45
  %v194 = vunpack.c.h.b16 %v45
  %v195 = vunpack.c.l.b16 %v46
  %v196 = vunpack.c.h.b16 %v46
  %v197 = vunpack.c.l.b16 %v47
  %v198 = vunpack.c.h.b16 %v47
  %v199 = vunpack.c.l.b16 %v48
  %v200 = vunpack.c.h.b16 %v48
  %v201 = vunpack.c.l.b16 %v49
  %v202 = vunpack.c.h.b16 %v49
  %v203 = vunpack.c.l.b16 %v50
  %v204 = vunpack.c.h.b16 %v50
  %v205 = vunpack.c.l.b16 %v51
  %v206 = vunpack.c.h.b16 %v51
  %v207 = vunpack.c.l.b16 %v52
  %v208 = vunpack.c.h.b16 %v52
  %v209 = vunpack.c.l.b16 %v53
  %v210 = vunpack.c.h.b16 %v53
  %v211 = vunpack.c.l.b16 %v54
  %v212 = vunpack.c.h.b16 %v54
  %v213 = vunpack.c.l.b16 %v55
  %v214 = vunpack.c.h.b16 %v55
  %v215 = vunpack.c.l.b16 %v56
  %v216 = vunpack.c.h.b16 %v56
  %v217 = vunpack.c.l.b16 %v57
  %v218 = vunpack.c.h.b16 %v57
  %v219 = vunpack.c.l.b16 %v58
  %v220 = vunpack.c.h.b16 %v58
  %v221 = vunpack.c.l.b16 %v59
  %v222 = vunpack.c.h.b16 %v59
  %v223 = vunpack.c.l.b16 %v60
  %v224 = vunpack.c.h.b16 %v60
  %v225 = vunpack.c.l.b16 %v61
  %v226 = vunpack.c.h.b16 %v61
  %v227 = vunpack.c.l.b16 %v62
  %v228 = vunpack.c.h.b16 %v62
  %v229 = vunpack.c.l.b16 %v63
  %v230 = vunpack.c.h.b16 %v63
  %v231 = vunpack.c.l.b16 %v64
  %v232 = vunpack.c.h.b16 %v64
  %v233 = vunpack.c.l.b16 %v65
  %v234 = vunpack.c.h.b16 %v65
  %v235 = vunpack.c.l.b16 %v66
  %v236 = vunpack.c.h.b16 %v66
  %v237 = vunpack.c.l.b16 %v67
  %v238 = vunpack.c.h.b16 %v67
  %v239 = vunpack.c.l.b16 %v68
  %v240 = vunpack.c.h.b16 %v68
  %v241 = vunpack.c.l.b16 %v69
  %v242 = vunpack.c.h.b16 %v69
  %v243 = vunpack.c.l.b16 %v70
  %v244 = vunpack.c.h.b16 %v70
  %v245 = vunpack.c.l.b16 %v71
  %v246 = vunpack.c.h.b16 %v71
  %v247 = vunpack.c.l.b16 %v72
  %v248 = vunpack.c.h.b16 %v72
  %v249 = vunpack.c.l.b16 %v73
  %v250 = vunpack.c.h.b16 %v73
  %v251 = vunpack.c.l.b16 %v74
  %v252 = vunpack.c.h.b16 %v74
  %v253 = vunpack.c.l.b16 %v75
  %v254 = vunpack.c.h.b16 %v75
  %v255 = vunpack.c.l.b16 %v76
  %v256 = vunpack.c.h.b16 %v76
  %v257 = vunpack.c.l.b16 %v77
  %v258 = vunpack.c.h.b16 %v77
  %v259 = vunpack.c.l.b16 %v78
  %v260 = vunpack.c.h.b16 %v78
  %v261 = vunpack.c.l.b16 %v79
  %v262 = vunpack.c.h.b16 %v79
  %v263 = vunpack.c.l.b16 %v80
  %v264 = vunpack.c.h.b16 %v80
  %v265 = vunpack.c.l.b16 %v81
  %v266 = vunpack.c.h.b16 %v81
  %v267 = vunpack.c.l.b16 %v82
  %v268 = vunpack.c.h.b16 %v82
  %v269 = vunpack.c.l.b16 %v83
  %v270 = vunpack.c.h.b16 %v83
  %v271 = vunpack.c.l.b16 %v84
  %v272 = vunpack.c.h.b16 %v84
  %v273 = vpack.c.b16 %v169, %v161
  %v274 = vpack.c.b16 %v170, %v162
  %v275 = vpack.c.b16 %v171, %v163
  %v276 = vpack.c.b16 %v172, %v164
  %v277 = vpack.c.b16 %v173, %v165
  %v278 = vpack.c.b16 %v174, %v166
  %v279 = vpack.c.b16 %v175, %v167
  %v280 = vpack.c.b16 %v176, %v168
  %v281 = vpack.c.b16 %v185, %v177
  %v282 = vpack.c.b16 %v186, %v178
  %v283 = vpack.c.b16 %v187, %v179
  %v284 = vpack.c.b16 %v188, %v180
  %v285 = vpack.c.b16 %v189, %v181
  %v286 = vpack.c.b16 %v190, %v182
  %v287 = vpack.c.b16 %v191, %v183
  %v288 = vpack.c.b16 %v192, %v184
  %v289 = vpack.c.b16 %v201, %v193
  %v290 = vpack.c.b16 %v202, %v194
  %v291 = vpack.c.b16 %v203, %v195
  %v292 = vpack.c.b16 %v204, %v196
  %v293 = vpack.c.b16 %v205, %v197
  %v294 = vpack.c.b16 %v206, %v198
  %v295 = vpack.c.b16 %v207, %v199
  %v296 = vpack.c.b16 %v208, %v200
  %v297 = vpack.c.b16 %v217, %v209
  %v298 = vpack.c.b16 %v218, %v210
  %v299 = vpack.c.b16 %v219, %v211
  %v300 = vpack.c.b16 %v220, %v212
  %v301 = vpack.c.b16 %v221, %v213
  %v302 = vpack.c.b16 %v222, %v214
  %v303 = vpack.c.b16 %v223, %v215
  %v304 = vpack.c.b16 %v224, %v216
  %v305 = vpack.c.b16 %v233, %v225
  %v306 = vpack.c.b16 %v234, %v226
  %v307 = vpack.c.b16 %v235, %v227
  %v308 = vpack.c.b16 %v236, %v228
  %v309 = vpack.c.b16 %v237, %v229
  %v310 = vpack.c.b16 %v238, %v230
  %v311 = vpack.c.b16 %v239, %v231
  %v312 = vpack.c.b16 %v240, %v232
  %v313 = vpack.c.b16 %v249, %v241
  %v314 = vpack.c.b16 %v250, %v242
  %v315 = vpack.c.b16 %v251, %v243
  %v316 = vpack.c.b16 %v252, %v244
  %v317 = vpack.c.b16 %v253, %v245
  %v318 = vpack.c.b16 %v254, %v246
  %v319 = vpack.c.b16 %v255, %v247
  %v320 = vpack.c.b16 %v256, %v248
  %v321 = vpack.c.b16 %v265, %v257
  %v322 = vpack.c.b16 %v266, %v258
  %v323 = vpack.c.b16 %v267, %v259
  %v324 = vpack.c.b16 %v268, %v260
  %v325 = vpack.c.b16 %v269, %v261
  %v326 = vpack.c.b16 %v270, %v262
  %v327 = vpack.c.b16 %v271, %v263
  %v328 = vpack.c.b16 %v272, %v264
  %vm385 = vcmask 916480
  %v387 = vsel %vm385, %v101, 0
  %v390 = vsel %vm385, %v102, 0
  %v393 = vsel %vm385, %v103, 0
  %v396 = vsel %vm385, %v104, 0
  %398 = vmatprep.subr.bf16.mxu0 0
  %399 = vmatpush1.bf16.msra.mxu0 0
  %400 = vmatprep.subr.bf16.mxu0 %v322
  %401 = vmatpush1.bf16.msra.mxu0 %v321
  %402 = vmatprep.subr.bf16.mxu0 %v314
  %403 = vmatpush1.bf16.msra.mxu0 %v313
  %404 = vmatprep.subr.bf16.mxu0 %v306
  %405 = vmatpush1.bf16.msra.mxu0 %v305
  %406 = vmatprep.subr.bf16.mxu0 %v298
  %407 = vmatpush1.bf16.msra.mxu0 %v297
  %408 = vmatprep.subr.bf16.mxu0 %v290
  %409 = vmatpush1.bf16.msra.mxu0 %v289
  %410 = vmatprep.subr.bf16.mxu0 %v282
  %411 = vmatpush1.bf16.msra.mxu0 %v281
  %412 = vmatprep.subr.bf16.mxu0 %v274
  %413 = vmatpush1.bf16.msra.mxu0 %v273
  %414 = vmatprep.subr.bf16.mxu0 0
  %415 = vmatpush2.bf16.msra.mxu0 0
  %416 = vmatprep.subr.bf16.mxu0 0
  %417 = vmatpush2.bf16.msra.mxu0 0
  %418 = vmatprep.subr.bf16.mxu0 0
  %419 = vmatpush2.bf16.msra.mxu0 0
  %420 = vmatprep.subr.bf16.mxu0 0
  %421 = vmatpush2.bf16.msra.mxu0 0
  %422 = vmatprep.subr.bf16.mxu0 0
  %423 = vmatpush2.bf16.msra.mxu0 0
  %424 = vmatprep.subr.bf16.mxu0 0
  %425 = vmatpush2.bf16.msra.mxu0 0
  %426 = vmatprep.subr.bf16.mxu0 0
  %427 = vmatpush2.bf16.msra.mxu0 0
  %428 = vmatprep.subr.bf16.mxu0 0
  %429 = vmatpush2.bf16.msra.mxu0 0
  %430 = vmatprep.mubr.bf16.mxu0 0
  %431 = vmatmul.mubr.bf16.gmra.mxu0 %v387
  %v432 = vpop.f32.mrf.mxu0
  %v433 = vadd.f32 0.0, %v432
  %v434 = vpop.f32.mrf.mxu0
  %v435 = vadd.f32 0.0, %v434
  %v436 = vpop.f32.mrf.mxu0
  %v437 = vadd.f32 0.0, %v436
  %v438 = vpop.f32.mrf.mxu0
  %v439 = vadd.f32 0.0, %v438
  %440 = vmatprep.mubr.bf16.mxu0 0
  %441 = vmatmul.mubr.bf16.gmra.mxu0 %v390
  %v442 = vpop.f32.mrf.mxu0
  %v443 = vadd.f32 0.0, %v442
  %v444 = vpop.f32.mrf.mxu0
  %v445 = vadd.f32 0.0, %v444
  %v446 = vpop.f32.mrf.mxu0
  %v447 = vadd.f32 0.0, %v446
  %v448 = vpop.f32.mrf.mxu0
  %v449 = vadd.f32 0.0, %v448
  %450 = vmatprep.mubr.bf16.mxu0 0
  %451 = vmatmul.mubr.bf16.gmra.mxu0 %v393
  %v452 = vpop.f32.mrf.mxu0
  %v453 = vadd.f32 0.0, %v452
  %v454 = vpop.f32.mrf.mxu0
  %v455 = vadd.f32 0.0, %v454
  %v456 = vpop.f32.mrf.mxu0
  %v457 = vadd.f32 0.0, %v456
  %v458 = vpop.f32.mrf.mxu0
  %v459 = vadd.f32 0.0, %v458
  %460 = vmatprep.mubr.bf16.mxu0 0
  %461 = vmatmul.mubr.bf16.gmra.mxu0 %v396
  %v462 = vpop.f32.mrf.mxu0
  %v463 = vadd.f32 0.0, %v462
  %v464 = vpop.f32.mrf.mxu0
  %v465 = vadd.f32 0.0, %v464
  %v466 = vpop.f32.mrf.mxu0
  %v467 = vadd.f32 0.0, %v466
  %v468 = vpop.f32.mrf.mxu0
  %v469 = vadd.f32 0.0, %v468
  %470 = vdwg.mxu0
  %471 = vmatprep.subr.bf16.mxu0 0
  %472 = vmatpush1.bf16.msra.mxu0 0
  %473 = vmatprep.subr.bf16.mxu0 %v324
  %474 = vmatpush1.bf16.msra.mxu0 %v323
  %475 = vmatprep.subr.bf16.mxu0 %v316
  %476 = vmatpush1.bf16.msra.mxu0 %v315
  %477 = vmatprep.subr.bf16.mxu0 %v308
  %478 = vmatpush1.bf16.msra.mxu0 %v307
  %479 = vmatprep.subr.bf16.mxu0 %v300
  %480 = vmatpush1.bf16.msra.mxu0 %v299
  %481 = vmatprep.subr.bf16.mxu0 %v292
  %482 = vmatpush1.bf16.msra.mxu0 %v291
  %483 = vmatprep.subr.bf16.mxu0 %v284
  %484 = vmatpush1.bf16.msra.mxu0 %v283
  %485 = vmatprep.subr.bf16.mxu0 %v276
  %486 = vmatpush1.bf16.msra.mxu0 %v275
  %487 = vmatprep.subr.bf16.mxu0 0
  %488 = vmatpush2.bf16.msra.mxu0 0
  %489 = vmatprep.subr.bf16.mxu0 0
  %490 = vmatpush2.bf16.msra.mxu0 0
  %491 = vmatprep.subr.bf16.mxu0 0
  %492 = vmatpush2.bf16.msra.mxu0 0
  %493 = vmatprep.subr.bf16.mxu0 0
  %494 = vmatpush2.bf16.msra.mxu0 0
  %495 = vmatprep.subr.bf16.mxu0 0
  %496 = vmatpush2.bf16.msra.mxu0 0
  %497 = vmatprep.subr.bf16.mxu0 0
  %498 = vmatpush2.bf16.msra.mxu0 0
  %499 = vmatprep.subr.bf16.mxu0 0
  %500 = vmatpush2.bf16.msra.mxu0 0
  %501 = vmatprep.subr.bf16.mxu0 0
  %502 = vmatpush2.bf16.msra.mxu0 0
  %503 = vmatprep.mubr.bf16.mxu0 0
  %504 = vmatmul.mubr.bf16.gmra.mxu0 %v387
  %v505 = vpop.f32.mrf.mxu0
  %v506 = vadd.f32 0.0, %v505
  %v507 = vpop.f32.mrf.mxu0
  %v508 = vadd.f32 0.0, %v507
  %v509 = vpop.f32.mrf.mxu0
  %v510 = vadd.f32 0.0, %v509
  %v511 = vpop.f32.mrf.mxu0
  %v512 = vadd.f32 0.0, %v511
  %513 = vmatprep.mubr.bf16.mxu0 0
  %514 = vmatmul.mubr.bf16.gmra.mxu0 %v390
  %v515 = vpop.f32.mrf.mxu0
  %v516 = vadd.f32 0.0, %v515
  %v517 = vpop.f32.mrf.mxu0
  %v518 = vadd.f32 0.0, %v517
  %v519 = vpop.f32.mrf.mxu0
  %v520 = vadd.f32 0.0, %v519
  %v521 = vpop.f32.mrf.mxu0
  %v522 = vadd.f32 0.0, %v521
  %523 = vmatprep.mubr.bf16.mxu0 0
  %524 = vmatmul.mubr.bf16.gmra.mxu0 %v393
  %v525 = vpop.f32.mrf.mxu0
  %v526 = vadd.f32 0.0, %v525
  %v527 = vpop.f32.mrf.mxu0
  %v528 = vadd.f32 0.0, %v527
  %v529 = vpop.f32.mrf.mxu0
  %v530 = vadd.f32 0.0, %v529
  %v531 = vpop.f32.mrf.mxu0
  %v532 = vadd.f32 0.0, %v531
  %533 = vmatprep.mubr.bf16.mxu0 0
  %534 = vmatmul.mubr.bf16.gmra.mxu0 %v396
  %v535 = vpop.f32.mrf.mxu0
  %v536 = vadd.f32 0.0, %v535
  %v537 = vpop.f32.mrf.mxu0
  %v538 = vadd.f32 0.0, %v537
  %v539 = vpop.f32.mrf.mxu0
  %v540 = vadd.f32 0.0, %v539
  %v541 = vpop.f32.mrf.mxu0
  %v542 = vadd.f32 0.0, %v541
  %543 = vdwg.mxu0
  %544 = vmatprep.subr.bf16.mxu0 0
  %545 = vmatpush1.bf16.msra.mxu0 0
  %546 = vmatprep.subr.bf16.mxu0 %v326
  %547 = vmatpush1.bf16.msra.mxu0 %v325
  %548 = vmatprep.subr.bf16.mxu0 %v318
  %549 = vmatpush1.bf16.msra.mxu0 %v317
  %550 = vmatprep.subr.bf16.mxu0 %v310
  %551 = vmatpush1.bf16.msra.mxu0 %v309
  %552 = vmatprep.subr.bf16.mxu0 %v302
  %553 = vmatpush1.bf16.msra.mxu0 %v301
  %554 = vmatprep.subr.bf16.mxu0 %v294
  %555 = vmatpush1.bf16.msra.mxu0 %v293
  %556 = vmatprep.subr.bf16.mxu0 %v286
  %557 = vmatpush1.bf16.msra.mxu0 %v285
  %558 = vmatprep.subr.bf16.mxu0 %v278
  %559 = vmatpush1.bf16.msra.mxu0 %v277
  %560 = vmatprep.subr.bf16.mxu0 0
  %561 = vmatpush2.bf16.msra.mxu0 0
  %562 = vmatprep.subr.bf16.mxu0 0
  %563 = vmatpush2.bf16.msra.mxu0 0
  %564 = vmatprep.subr.bf16.mxu0 0
  %565 = vmatpush2.bf16.msra.mxu0 0
  %566 = vmatprep.subr.bf16.mxu0 0
  %567 = vmatpush2.bf16.msra.mxu0 0
  %568 = vmatprep.subr.bf16.mxu0 0
  %569 = vmatpush2.bf16.msra.mxu0 0
  %570 = vmatprep.subr.bf16.mxu0 0
  %571 = vmatpush2.bf16.msra.mxu0 0
  %572 = vmatprep.subr.bf16.mxu0 0
  %573 = vmatpush2.bf16.msra.mxu0 0
  %574 = vmatprep.subr.bf16.mxu0 0
  %575 = vmatpush2.bf16.msra.mxu0 0
  %576 = vmatprep.mubr.bf16.mxu0 0
  %577 = vmatmul.mubr.bf16.gmra.mxu0 %v387
  %v578 = vpop.f32.mrf.mxu0
  %v579 = vadd.f32 0.0, %v578
  %v580 = vpop.f32.mrf.mxu0
  %v581 = vadd.f32 0.0, %v580
  %v582 = vpop.f32.mrf.mxu0
  %v583 = vadd.f32 0.0, %v582
  %v584 = vpop.f32.mrf.mxu0
  %v585 = vadd.f32 0.0, %v584
  %586 = vmatprep.mubr.bf16.mxu0 0
  %587 = vmatmul.mubr.bf16.gmra.mxu0 %v390
  %v588 = vpop.f32.mrf.mxu0
  %v589 = vadd.f32 0.0, %v588
  %v590 = vpop.f32.mrf.mxu0
  %v591 = vadd.f32 0.0, %v590
  %v592 = vpop.f32.mrf.mxu0
  %v593 = vadd.f32 0.0, %v592
  %v594 = vpop.f32.mrf.mxu0
  %v595 = vadd.f32 0.0, %v594
  %596 = vmatprep.mubr.bf16.mxu0 0
  %597 = vmatmul.mubr.bf16.gmra.mxu0 %v393
  %v598 = vpop.f32.mrf.mxu0
  %v599 = vadd.f32 0.0, %v598
  %v600 = vpop.f32.mrf.mxu0
  %v601 = vadd.f32 0.0, %v600
  %v602 = vpop.f32.mrf.mxu0
  %v603 = vadd.f32 0.0, %v602
  %v604 = vpop.f32.mrf.mxu0
  %v605 = vadd.f32 0.0, %v604
  %606 = vmatprep.mubr.bf16.mxu0 0
  %607 = vmatmul.mubr.bf16.gmra.mxu0 %v396
  %v608 = vpop.f32.mrf.mxu0
  %v609 = vadd.f32 0.0, %v608
  %v610 = vpop.f32.mrf.mxu0
  %v611 = vadd.f32 0.0, %v610
  %v612 = vpop.f32.mrf.mxu0
  %v613 = vadd.f32 0.0, %v612
  %v614 = vpop.f32.mrf.mxu0
  %v615 = vadd.f32 0.0, %v614
  %616 = vdwg.mxu0
  %617 = vmatprep.subr.bf16.mxu0 0
  %618 = vmatpush1.bf16.msra.mxu0 0
  %619 = vmatprep.subr.bf16.mxu0 %v328
  %620 = vmatpush1.bf16.msra.mxu0 %v327
  %621 = vmatprep.subr.bf16.mxu0 %v320
  %622 = vmatpush1.bf16.msra.mxu0 %v319
  %623 = vmatprep.subr.bf16.mxu0 %v312
  %624 = vmatpush1.bf16.msra.mxu0 %v311
  %625 = vmatprep.subr.bf16.mxu0 %v304
  %626 = vmatpush1.bf16.msra.mxu0 %v303
  %627 = vmatprep.subr.bf16.mxu0 %v296
  %628 = vmatpush1.bf16.msra.mxu0 %v295
  %629 = vmatprep.subr.bf16.mxu0 %v288
  %630 = vmatpush1.bf16.msra.mxu0 %v287
  %631 = vmatprep.subr.bf16.mxu0 %v280
  %632 = vmatpush1.bf16.msra.mxu0 %v279
  %633 = vmatprep.subr.bf16.mxu0 0
  %634 = vmatpush2.bf16.msra.mxu0 0
  %635 = vmatprep.subr.bf16.mxu0 0
  %636 = vmatpush2.bf16.msra.mxu0 0
  %637 = vmatprep.subr.bf16.mxu0 0
  %638 = vmatpush2.bf16.msra.mxu0 0
  %639 = vmatprep.subr.bf16.mxu0 0
  %640 = vmatpush2.bf16.msra.mxu0 0
  %641 = vmatprep.subr.bf16.mxu0 0
  %642 = vmatpush2.bf16.msra.mxu0 0
  %643 = vmatprep.subr.bf16.mxu0 0
  %644 = vmatpush2.bf16.msra.mxu0 0
  %645 = vmatprep.subr.bf16.mxu0 0
  %646 = vmatpush2.bf16.msra.mxu0 0
  %647 = vmatprep.subr.bf16.mxu0 0
  %648 = vmatpush2.bf16.msra.mxu0 0
  %649 = vmatprep.mubr.bf16.mxu0 0
  %650 = vmatmul.mubr.bf16.gmra.mxu0 %v387
  %v651 = vpop.f32.mrf.mxu0
  %v652 = vadd.f32 0.0, %v651
  %v653 = vpop.f32.mrf.mxu0
  %v654 = vadd.f32 0.0, %v653
  %v655 = vpop.f32.mrf.mxu0
  %v656 = vadd.f32 0.0, %v655
  %v657 = vpop.f32.mrf.mxu0
  %v658 = vadd.f32 0.0, %v657
  %659 = vmatprep.mubr.bf16.mxu0 0
  %660 = vmatmul.mubr.bf16.gmra.mxu0 %v390
  %v661 = vpop.f32.mrf.mxu0
  %v662 = vadd.f32 0.0, %v661
  %v663 = vpop.f32.mrf.mxu0
  %v664 = vadd.f32 0.0, %v663
  %v665 = vpop.f32.mrf.mxu0
  %v666 = vadd.f32 0.0, %v665
  %v667 = vpop.f32.mrf.mxu0
  %v668 = vadd.f32 0.0, %v667
  %669 = vmatprep.mubr.bf16.mxu0 0
  %670 = vmatmul.mubr.bf16.gmra.mxu0 %v393
  %v671 = vpop.f32.mrf.mxu0
  %v672 = vadd.f32 0.0, %v671
  %v673 = vpop.f32.mrf.mxu0
  %v674 = vadd.f32 0.0, %v673
  %v675 = vpop.f32.mrf.mxu0
  %v676 = vadd.f32 0.0, %v675
  %v677 = vpop.f32.mrf.mxu0
  %v678 = vadd.f32 0.0, %v677
  %679 = vmatprep.mubr.bf16.mxu0 0
  %680 = vmatmul.mubr.bf16.gmra.mxu0 %v396
  %v681 = vpop.f32.mrf.mxu0
  %v682 = vadd.f32 0.0, %v681
  %v683 = vpop.f32.mrf.mxu0
  %v684 = vadd.f32 0.0, %v683
  %v685 = vpop.f32.mrf.mxu0
  %v686 = vadd.f32 0.0, %v685
  %v687 = vpop.f32.mrf.mxu0
  %v688 = vadd.f32 0.0, %v687
  %689 = vdwg.mxu0
  %v690 = vmax.f32 %v433, %v435
  %v691 = vmax.f32 %v437, %v439
  %v692 = vmax.f32 %v443, %v445
  %v693 = vmax.f32 %v447, %v449
  %v694 = vmax.f32 %v453, %v455
  %v695 = vmax.f32 %v457, %v459
  %v696 = vmax.f32 %v463, %v465
  %v697 = vmax.f32 %v467, %v469
  %v698 = vmax.f32 %v690, %v506
  %v699 = vmax.f32 %v691, %v510
  %v700 = vmax.f32 %v692, %v516
  %v701 = vmax.f32 %v693, %v520
  %v702 = vmax.f32 %v694, %v526
  %v703 = vmax.f32 %v695, %v530
  %v704 = vmax.f32 %v696, %v536
  %v705 = vmax.f32 %v697, %v540
  %v706 = vmax.f32 %v698, %v508
  %v707 = vmax.f32 %v699, %v512
  %v708 = vmax.f32 %v700, %v518
  %v709 = vmax.f32 %v701, %v522
  %v710 = vmax.f32 %v702, %v528
  %v711 = vmax.f32 %v703, %v532
  %v712 = vmax.f32 %v704, %v538
  %v713 = vmax.f32 %v705, %v542
  %v714 = vmax.f32 %v706, %v579
  %v715 = vmax.f32 %v707, %v583
  %v716 = vmax.f32 %v708, %v589
  %v717 = vmax.f32 %v709, %v593
  %v718 = vmax.f32 %v710, %v599
  %v719 = vmax.f32 %v711, %v603
  %v720 = vmax.f32 %v712, %v609
  %v721 = vmax.f32 %v713, %v613
  %v722 = vmax.f32 %v714, %v581
  %v723 = vmax.f32 %v715, %v585
  %v724 = vmax.f32 %v716, %v591
  %v725 = vmax.f32 %v717, %v595
  %v726 = vmax.f32 %v718, %v601
  %v727 = vmax.f32 %v719, %v605
  %v728 = vmax.f32 %v720, %v611
  %v729 = vmax.f32 %v721, %v615
  %v730 = vmax.f32 %v722, %v652
  %v731 = vmax.f32 %v723, %v656
  %v732 = vmax.f32 %v724, %v662
  %v733 = vmax.f32 %v725, %v666
  %v734 = vmax.f32 %v726, %v672
  %v735 = vmax.f32 %v727, %v676
  %v736 = vmax.f32 %v728, %v682
  %v737 = vmax.f32 %v729, %v686
  %v738 = vmax.f32 %v730, %v654
  %v739 = vmax.f32 %v731, %v658
  %v740 = vmax.f32 %v732, %v664
  %v741 = vmax.f32 %v733, %v668
  %v742 = vmax.f32 %v734, %v674
  %v743 = vmax.f32 %v735, %v678
  %v744 = vmax.f32 %v736, %v684
  %v745 = vmax.f32 %v737, %v688
  %v746 = vld [vmem:[%s2] sm:$0xff]
  %v747 = vld [vmem:[%s2 + $0x8] sm:$0xff]
  %v748 = vld [vmem:[%s2 + $0x10] sm:$0xff]
  %v749 = vld [vmem:[%s2 + $0x18] sm:$0xff]
  %v750 = vld [vmem:[%s2 + $0x20] sm:$0xff]
  %v751 = vld [vmem:[%s2 + $0x28] sm:$0xff]
  %v752 = vld [vmem:[%s2 + $0x30] sm:$0xff]
  %v753 = vld [vmem:[%s2 + $0x38] sm:$0xff]
  %755 = vset.pattern.permute.xlu0 0
  %756 = vperm.xlu0 %755, %v746
  %v757 = vpop.permute.xlu0 %756
  %760 = vset.pattern.permute.xlu0 0
  %761 = vperm.xlu0 %760, %v747
  %v762 = vpop.permute.xlu0 %761
  %765 = vset.pattern.permute.xlu0 0
  %766 = vperm.xlu0 %765, %v748
  %v767 = vpop.permute.xlu0 %766
  %770 = vset.pattern.permute.xlu0 0
  %771 = vperm.xlu0 %770, %v749
  %v772 = vpop.permute.xlu0 %771
  %775 = vset.pattern.permute.xlu0 0
  %776 = vperm.xlu0 %775, %v750
  %v777 = vpop.permute.xlu0 %776
  %780 = vset.pattern.permute.xlu0 0
  %781 = vperm.xlu0 %780, %v751
  %v782 = vpop.permute.xlu0 %781
  %785 = vset.pattern.permute.xlu0 0
  %786 = vperm.xlu0 %785, %v752
  %v787 = vpop.permute.xlu0 %786
  %790 = vset.pattern.permute.xlu0 0
  %791 = vperm.xlu0 %790, %v753
  %v792 = vpop.permute.xlu0 %791
  %v794 = vadd.f32 %v738, %v757
  %v795 = vadd.f32 %v739, %v762
  %v796 = vadd.f32 %v740, %v767
  %v797 = vadd.f32 %v741, %v772
  %v798 = vadd.f32 %v742, %v777
  %v799 = vadd.f32 %v743, %v782
  %v800 = vadd.f32 %v744, %v787
  %v801 = vadd.f32 %v745, %v792
  %v802 = vmax.f32 %v794, 0.0
  %v803 = vmax.f32 %v795, 0.0
  %v804 = vmax.f32 %v796, 0.0
  %v805 = vmax.f32 %v797, 0.0
  %v806 = vmax.f32 %v798, 0.0
  %v807 = vmax.f32 %v799, 0.0
  %v808 = vmax.f32 %v800, 0.0
  %v809 = vmax.f32 %v801, 0.0
  %v810 = vld [vmem:[%s3] sm:$0xf]
  %v811 = vld [vmem:[%s3 + $0x4] sm:$0xf]
  %v812 = vld [vmem:[%s3 + $0x8] sm:$0xf]
  %v813 = vpack.c.bf16 %v803, %v802
  %v814 = vpack.c.bf16 %v805, %v804
  %v815 = vpack.c.bf16 %v807, %v806
  %v816 = vpack.c.bf16 %v809, %v808
  %v817 = vld [vmem:[%s4] sm:$0xff]
  %v818 = vld [vmem:[%s4 + $0x8] sm:$0xff]
  %v819 = vld [vmem:[%s4 + $0x10] sm:$0xff]
  %821 = vset.pattern.permute.xlu0 0
  %822 = vperm.xlu0 %821, %v817
  %v823 = vpop.permute.xlu0 %822
  %826 = vset.pattern.permute.xlu0 0
  %827 = vperm.xlu0 %826, %v818
  %v828 = vpop.permute.xlu0 %827
  %831 = vset.pattern.permute.xlu0 0
  %832 = vperm.xlu0 %831, %v819
  %v833 = vpop.permute.xlu0 %832
  %v838 = vunpack.c.l.b16 %v810
  %v839 = vunpack.c.l.b16 %v811
  %v840 = vunpack.c.l.b16 %v812
  %v841 = vpack.c.b16 %v839, %v838
  %v842 = vpack.c.b16 %v840, %v840
  %vm843 = vcmask 523264
  %v845 = vsel %vm843, %v841, 0
  %v848 = vsel %vm843, %v842, 0
  %850 = vmatprep.subr.bf16.mxu0 0
  %851 = vmatpush1.bf16.msra.mxu0 0
  %852 = vmatprep.subr.bf16.mxu0 0
  %853 = vmatpush1.bf16.msra.mxu0 0
  %854 = vmatprep.subr.bf16.mxu0 0
  %855 = vmatpush1.bf16.msra.mxu0 0
  %856 = vmatprep.subr.bf16.mxu0 0
  %857 = vmatpush1.bf16.msra.mxu0 0
  %858 = vmatprep.subr.bf16.mxu0 0
  %859 = vmatpush1.bf16.msra.mxu0 %v816
  %860 = vmatprep.subr.bf16.mxu0 0
  %861 = vmatpush1.bf16.msra.mxu0 %v815
  %862 = vmatprep.subr.bf16.mxu0 0
  %863 = vmatpush1.bf16.msra.mxu0 %v814
  %864 = vmatprep.subr.bf16.mxu0 0
  %865 = vmatpush1.bf16.msra.mxu0 %v813
  %866 = vmatprep.subr.bf16.mxu0 0
  %867 = vmatpush2.bf16.msra.mxu0 0
  %868 = vmatprep.subr.bf16.mxu0 0
  %869 = vmatpush2.bf16.msra.mxu0 0
  %870 = vmatprep.subr.bf16.mxu0 0
  %871 = vmatpush2.bf16.msra.mxu0 0
  %872 = vmatprep.subr.bf16.mxu0 0
  %873 = vmatpush2.bf16.msra.mxu0 0
  %874 = vmatprep.subr.bf16.mxu0 0
  %875 = vmatpush2.bf16.msra.mxu0 0
  %876 = vmatprep.subr.bf16.mxu0 0
  %877 = vmatpush2.bf16.msra.mxu0 0
  %878 = vmatprep.subr.bf16.mxu0 0
  %879 = vmatpush2.bf16.msra.mxu0 0
  %880 = vmatprep.subr.bf16.mxu0 0
  %881 = vmatpush2.bf16.msra.mxu0 0
  %882 = vmatprep.mubr.bf16.mxu0 0
  %883 = vmatmul.mubr.bf16.gmra.mxu0 %v845
  %v884 = vpop.f32.mrf.mxu0
  %v885 = vadd.f32 %v823, %v884
  %v886 = vpop.f32.mrf.mxu0
  %v887 = vpop.f32.mrf.mxu0
  %v888 = vadd.f32 %v828, %v887
  %v889 = vpop.f32.mrf.mxu0
  %890 = vmatprep.mubr.bf16.mxu0 0
  %891 = vmatmul.mubr.bf16.gmra.mxu0 %v848
  %v892 = vpop.f32.mrf.mxu0
  %v893 = vadd.f32 %v833, %v892
  %v894 = vpop.f32.mrf.mxu0
  %v895 = vpop.f32.mrf.mxu0
  %v896 = vpop.f32.mrf.mxu0
  %897 = vdwg.mxu0
  %v898 = vmax.f32 %v885, %v888
  %v899 = vmax.f32 %v898, %v893
  %v900 = vsub.f32 %v885, %v899
  %v901 = vsub.f32 %v888, %v899
  %v902 = vsub.f32 %v893, %v899
  %v903 = vmul.f32 %v900, 1.442695
  %v904 = vpow.pop %v903
  %v905 = vmul.f32 %v901, 1.442695
  %v906 = vpow.pop %v905
  %v907 = vmul.f32 %v902, 1.442695
  %v908 = vpow.pop %v907
  %v909 = vadd.f32 %v904, %v906
  %v910 = vadd.f32 %v909, %v908
  %v911 = vrcp.pop %v910
  %v912 = vmul.f32 %v904, %v911
  %v913 = vmul.f32 %v906, %v911
  %v914 = vmul.f32 %v908, %v911
  %915 = vst [vmem:[%s5] sm:$0xff] %v912
  %916 = vst [vmem:[%s5 + $0x8] sm:$0xff] %v913
  %917 = vst [vmem:[%s5 + $0x10] sm:$0xff] %v914
  // Predicated region
  $region22: #{fcnn3d_forward.1} parent=0 // pred_check
    _
  $region23: #{fcnn3d_forward.1} parent=0 // pred_check_branch
    %919 = sbr.rel (0) target = $region25
  $region24: #{fcnn3d_forward.1} parent=0 // pred_region
    _
  $region25: #{fcnn3d_forward.1} parent=0 // pred_fallthru
    _
  // Predicated region
  $region26: #{fcnn3d_forward.1} parent=0 // pred_check
    _
  $region27: #{fcnn3d_forward.1} parent=0 // pred_check_branch
    %921 = sbr.rel (0) target = $region29
  $region28: #{fcnn3d_forward.1} parent=0 // pred_region
    _
  $region29: #{fcnn3d_forward.1} parent=0 // pred_fallthru
    _

</llo_original>
